<compile_context>
chip_gen: v7x
topology: tpu7x:2x2x1
jax: 0.10.0
libtpu: 0.0.40
codegen_flags: <defaults>
</compile_context>

<pallas_src>
import functools

import jax
import jax.numpy as jnp
from jax import lax
from jax.experimental import pallas as pl
from jax.experimental.pallas import tpu as pltpu

LEAKY_SLOPE = 0.1   # module uses nn.LeakyReLU(0.1)
BN_EPS = 1e-5


def _leaky_relu(x):
    return jnp.where(x > 0, x, LEAKY_SLOPE * x)


def residual_block_kernel(p1_ref, w1_ref, w2_ref, ep_ref, o_ref, *, img_h):
    # p1_ref: (M, 3*W*Cin)   bf16  conv1 patches (y-taps concat), lane-dense
    # w1_ref: (3*W*Cin, 2*W*Cout) bf16 banded conv1 weights | fused 1x1 proj
    # w2_ref: (3*W*Cout, W*Cout)  bf16 banded conv2 weights
    # ep_ref: (4, 2*W*Cout)  f32   [bn1 scale|1 ; bn1 bias|proj bias ; bn2 s ; bn2 b]
    # o_ref:  (M, W*Cout)    f32   lane-dense output slab, M = N*H
    m, wc = o_ref.shape

    # ---- conv1 (+ fused 1x1 projection): one banded matmul ----
    t = jnp.dot(p1_ref[...], w1_ref[...], preferred_element_type=jnp.float32)
    t = t * ep_ref[0:1, :] + ep_ref[1:2, :]        # (M, 2*wc) BN1 | proj bias
    h1 = _leaky_relu(t[:, :wc])                    # (M, wc)
    res = t[:, wc:]                                # projection residual

    # ---- conv2: dy neighbours via sublane roll + per-image border masks ----
    # (dx taps and x zero-padding live in the banded weight, so no lane-axis
    #  slicing / padding / reshapes are needed here.)
    row = lax.broadcasted_iota(jnp.int32, (m, 1), 0)
    up = jnp.where(row % img_h == 0, 0.0, pltpu.roll(h1, 1, axis=0))
    dn = jnp.where(row % img_h == img_h - 1, 0.0, pltpu.roll(h1, m - 1, axis=0))
    p2 = jnp.concatenate([up, h1, dn], axis=-1).astype(jnp.bfloat16)  # (M, 3*wc)

    a2 = jnp.dot(p2, w2_ref[...], preferred_element_type=jnp.float32)
    h2 = _leaky_relu(a2 * ep_ref[2:3, :wc] + ep_ref[3:4, :wc])

    # ---- residual add + lane-dense (M, 128) unmasked store ----
    o_ref[...] = h2 + res


def fold_bn(gamma, beta, mean, var):
    scale = gamma / jnp.sqrt(var + BN_EPS)
    bias = beta - mean * scale
    return scale, bias


def _band_block(w_taps, width):
    """Banded block for one dy row of a 3x3 conv in lane-dense layout.

    w_taps: (3, Ci, Co) taps for dx = 0, 1, 2.  Returns (width*Ci, width*Co)
    mapping lanes (x*Ci + ci) -> (x'*Co + co) with w_taps[dx] on the block
    diagonal offset by dx-1; the implicit zero x-padding is handled by the
    band simply having no source column outside [0, width).
    """
    blk = jnp.zeros((width * w_taps.shape[1], width * w_taps.shape[2]),
                    jnp.float32)
    for dx in range(3):
        shift = jnp.eye(width, k=1 - dx, dtype=jnp.float32)  # [x,x']=1 iff x==x'+dx-1
        blk = blk + jnp.kron(shift, w_taps[dx].astype(jnp.float32))
    return blk


@jax.jit
def residual_conv_block(x_nhwc, params):
    n, h, w, cin = x_nhwc.shape
    cout = params["w1"].shape[-1]
    wc = w * cout
    m = n * h

    # Folded BN params (inference mode).
    s1, b1 = fold_bn(params["gamma1"], params["beta1"],
                     params["mean1"], params["var1"])
    s2, b2 = fold_bn(params["gamma2"], params["beta2"],
                     params["mean2"], params["var2"])

    w1 = params["w1"].astype(jnp.float32)    # (3, 3, Cin, Cout) HWIO
    w2 = params["w2"].astype(jnp.float32)    # (3, 3, Cout, Cout)

    # Banded conv1 weights, (3*W*Cin, W*Cout), rows grouped by dy.
    main_cols = jnp.concatenate([_band_block(w1[dy], w) for dy in range(3)],
                                axis=0)
    # 1x1 projection fused as extra output columns: only the dy=1 (center row)
    # block contributes, with wp on the exact block diagonal (dx = center).
    proj_blk = jnp.kron(jnp.eye(w, dtype=jnp.float32),
                        params["wp"].astype(jnp.float32))
    proj_cols = jnp.concatenate(
        [jnp.zeros_like(proj_blk), proj_blk, jnp.zeros_like(proj_blk)], axis=0)
    w1band = jnp.concatenate([main_cols, proj_cols],
                             axis=1).astype(jnp.bfloat16)   # (3*W*Cin, 2*wc)

    w2band = jnp.concatenate([_band_block(w2[dy], w) for dy in range(3)],
                             axis=0).astype(jnp.bfloat16)   # (3*wc, wc)

    # Packed epilogue parameters: one f32 array, lane layout x*Cout + co.
    bp = params["bp"].astype(jnp.float32)
    ep = jnp.stack([
        jnp.concatenate([jnp.tile(s1, w), jnp.ones((wc,), jnp.float32)]),
        jnp.concatenate([jnp.tile(b1, w), jnp.tile(bp, w)]),
        jnp.concatenate([jnp.tile(s2, w), jnp.zeros((wc,), jnp.float32)]),
        jnp.concatenate([jnp.tile(b2, w), jnp.zeros((wc,), jnp.float32)]),
    ])                                                       # (4, 2*wc) f32

    # conv1 patches hoisted to the wrapper (fused XLA pad/slice/concat),
    # lane-dense: p1[(n,y), dy*W*Cin + x*Cin + ci] = x_padY[n, y+dy, x, ci].
    xl = x_nhwc.reshape(n, h, w * cin)
    xp = jnp.pad(xl, ((0, 0), (1, 1), (0, 0)))
    p1 = jnp.concatenate([xp[:, dy:dy + h, :] for dy in range(3)], axis=-1)
    p1 = p1.reshape(m, 3 * w * cin).astype(jnp.bfloat16)     # (M, 3*W*Cin)

    k1, n1 = 3 * w * cin, 2 * wc
    k2, n2 = 3 * wc, wc
    flops = 2 * m * (k1 * n1 + k2 * n2)
    bytes_accessed = (p1.size * 2 + w1band.size * 2 + w2band.size * 2
                      + ep.size * 4 + m * wc * 4)

    out = pl.pallas_call(
        functools.partial(residual_block_kernel, img_h=h),
        out_shape=jax.ShapeDtypeStruct((m, wc), jnp.float32),
        grid=(1,),                      # batch folded into matmul M dimension
        in_specs=[
            pl.BlockSpec((m, k1), lambda i: (0, 0)),
            pl.BlockSpec((k1, n1), lambda i: (0, 0)),
            pl.BlockSpec((k2, n2), lambda i: (0, 0)),
            pl.BlockSpec((4, n1), lambda i: (0, 0)),
        ],
        out_specs=pl.BlockSpec((m, wc), lambda i: (0, 0)),
        compiler_params=pltpu.CompilerParams(
            dimension_semantics=("arbitrary",)),
        cost_estimate=pl.CostEstimate(
            flops=flops, transcendentals=0, bytes_accessed=bytes_accessed),
    )(p1, w1band, w2band, ep)

    # Lane-dense (N*H, W*Cout) -> NHWC; contiguous, free in XLA.
    return out.reshape(n, h, w, cout)


def reference_forward(x_nhwc, params):
    """Pure-JAX f32 reference (same NHWC layout, PyTorch semantics)."""
    dn = ("NHWC", "HWIO", "NHWC")
    cout = params["w1"].shape[-1]
    cin = x_nhwc.shape[-1]

    s1, b1 = fold_bn(params["gamma1"], params["beta1"],
                     params["mean1"], params["var1"])
    s2, b2 = fold_bn(params["gamma2"], params["beta2"],
                     params["mean2"], params["var2"])

    h = lax.conv_general_dilated(x_nhwc, params["w1"], (1, 1), "SAME",
                                 dimension_numbers=dn)
    h = _leaky_relu(h * s1.reshape(1, 1, 1, cout) + b1.reshape(1, 1, 1, cout))
    h = lax.conv_general_dilated(h, params["w2"], (1, 1), "SAME",
                                 dimension_numbers=dn)
    h = _leaky_relu(h * s2.reshape(1, 1, 1, cout) + b2.reshape(1, 1, 1, cout))

    res = lax.conv_general_dilated(
        x_nhwc, params["wp"].reshape(1, 1, cin, cout), (1, 1), "SAME",
        dimension_numbers=dn) + params["bp"].reshape(1, 1, 1, cout)
    return h + res


if __name__ == "__main__":
    N, Cin, Cout, H, W = 2, 4, 8, 16, 16

    key = jax.random.PRNGKey(0)
    keys = jax.random.split(key, 12)

    x = jax.random.normal(keys[0], (N, H, W, Cin), jnp.float32)

    params = {
        "w1": 0.1 * jax.random.normal(keys[1], (3, 3, Cin, Cout), jnp.float32),
        "gamma1": 1.0 + 0.1 * jax.random.normal(keys[2], (Cout,), jnp.float32),
        "beta1": 0.1 * jax.random.normal(keys[3], (Cout,), jnp.float32),
        "mean1": 0.1 * jax.random.normal(keys[4], (Cout,), jnp.float32),
        "var1": 0.5 + jnp.abs(jax.random.normal(keys[5], (Cout,), jnp.float32)),
        "w2": 0.1 * jax.random.normal(keys[6], (3, 3, Cout, Cout), jnp.float32),
        "gamma2": 1.0 + 0.1 * jax.random.normal(keys[7], (Cout,), jnp.float32),
        "beta2": 0.1 * jax.random.normal(keys[8], (Cout,), jnp.float32),
        "mean2": 0.1 * jax.random.normal(keys[9], (Cout,), jnp.float32),
        "var2": 0.5 + jnp.abs(jax.random.normal(keys[10], (Cout,), jnp.float32)),
        "wp": 0.1 * jax.random.normal(keys[11], (Cin, Cout), jnp.float32),
        "bp": jnp.linspace(-0.1, 0.1, Cout, dtype=jnp.float32),
    }

    out = residual_conv_block(x, params)
    out = jax.block_until_ready(out)

    ref = jax.block_until_ready(reference_forward(x, params))
    assert out.shape == (N, H, W, Cout)
    # Tolerance accounts for bf16 matmul inputs (f32 accumulation/epilogue).
    assert jnp.allclose(out, ref, atol=5e-2, rtol=5e-2), (
        f"max err {jnp.max(jnp.abs(out - ref))}")

    print("KERNEL_OK")
</pallas_src>

<mosaic_0001>
module attributes {stable_mosaic.version = 11 : i64} {
  func.func @residual_block_kernel(%arg0: i32, %arg1: memref<32x192xbf16, #tpu.memory_space<vmem>>, %arg2: memref<192x256xbf16, #tpu.memory_space<vmem>>, %arg3: memref<384x128xbf16, #tpu.memory_space<vmem>>, %arg4: memref<4x256xf32, #tpu.memory_space<vmem>>, %arg5: memref<32x128xf32, #tpu.memory_space<vmem>>) attributes {dimension_semantics = [#tpu.dimension_semantics<arbitrary>], iteration_bounds = array<i64: 1>, scalar_prefetch = 0 : i64, scratch_operands = 0 : i64, tpu.core_type = #tpu.core_type<tc>, window_params = [{pipeline_mode = #tpu.pipeline_mode<synchronous>, transform_indices = @transform_0, window_bounds = array<i64: 32, 192>}, {pipeline_mode = #tpu.pipeline_mode<synchronous>, transform_indices = @transform_1, window_bounds = array<i64: 192, 256>}, {pipeline_mode = #tpu.pipeline_mode<synchronous>, transform_indices = @transform_2, window_bounds = array<i64: 384, 128>}, {pipeline_mode = #tpu.pipeline_mode<synchronous>, transform_indices = @transform_3, window_bounds = array<i64: 4, 256>}, {pipeline_mode = #tpu.pipeline_mode<synchronous>, transform_indices = @transform_4, window_bounds = array<i64: 32, 128>}]} {
    %c0 = arith.constant 0 : index
    %c0_0 = arith.constant 0 : index
    %0 = vector.load %arg1[%c0, %c0_0] : memref<32x192xbf16, #tpu.memory_space<vmem>>, vector<32x192xbf16>
    %c0_1 = arith.constant 0 : index
    %c0_2 = arith.constant 0 : index
    %1 = vector.load %arg2[%c0_1, %c0_2] : memref<192x256xbf16, #tpu.memory_space<vmem>>, vector<192x256xbf16>
    %cst = arith.constant dense<0.000000e+00> : vector<32x256xf32>
    %2 = tpu.matmul %0, %1, %cst {dimension_numbers = #tpu.dot_dimension_numbers<[1], [0], [0], [1], [0, 0, 1, 1], [], []>} : vector<32x192xbf16>, vector<192x256xbf16>, vector<32x256xf32> -> vector<32x256xf32>
    %c0_3 = arith.constant 0 : index
    %c0_4 = arith.constant 0 : index
    %3 = vector.load %arg4[%c0_3, %c0_4] : memref<4x256xf32, #tpu.memory_space<vmem>>, vector<1x256xf32>
    %4 = vector.broadcast %3 : vector<1x256xf32> to vector<32x256xf32>
    %5 = arith.mulf %2, %4 : vector<32x256xf32>
    %c1 = arith.constant 1 : index
    %c0_5 = arith.constant 0 : index
    %6 = vector.load %arg4[%c1, %c0_5] : memref<4x256xf32, #tpu.memory_space<vmem>>, vector<1x256xf32>
    %7 = vector.broadcast %6 : vector<1x256xf32> to vector<32x256xf32>
    %8 = arith.addf %5, %7 : vector<32x256xf32>
    %9 = vector.extract_strided_slice %8 {offsets = [0, 0], sizes = [32, 128], strides = [1, 1]} : vector<32x256xf32> to vector<32x128xf32>
    %cst_6 = arith.constant 0.000000e+00 : f32
    %10 = vector.broadcast %cst_6 : f32 to vector<32x128xf32>
    %11 = arith.cmpf ogt, %9, %10 : vector<32x128xf32>
    %cst_7 = arith.constant 1.000000e-01 : f32
    %12 = vector.broadcast %cst_7 : f32 to vector<32x128xf32>
    %13 = arith.mulf %12, %9 : vector<32x128xf32>
    %14 = arith.select %11, %9, %13 : vector<32x128xi1>, vector<32x128xf32>
    %15 = vector.extract_strided_slice %8 {offsets = [0, 128], sizes = [32, 128], strides = [1, 1]} : vector<32x256xf32> to vector<32x128xf32>
    %16 = tpu.iota {dimensions = array<i32: 0>} : vector<32x1xi32>
    %c16_i32 = arith.constant 16 : i32
    %c0_i32 = arith.constant 0 : i32
    %17 = arith.cmpi eq, %c16_i32, %c0_i32 : i32
    %c1_i32 = arith.constant 1 : i32
    %18 = arith.select %17, %c1_i32, %c16_i32 : i32
    %19 = vector.broadcast %18 : i32 to vector<32x1xi32>
    %20 = arith.remsi %16, %19 : vector<32x1xi32>
    %c0_i32_8 = arith.constant 0 : i32
    %21 = vector.broadcast %c0_i32_8 : i32 to vector<32x1xi32>
    %22 = arith.cmpi ne, %20, %21 : vector<32x1xi32>
    %c0_i32_9 = arith.constant 0 : i32
    %23 = vector.broadcast %c0_i32_9 : i32 to vector<32x1xi32>
    %24 = arith.cmpi slt, %20, %23 : vector<32x1xi32>
    %c0_i32_10 = arith.constant 0 : i32
    %25 = arith.cmpi slt, %18, %c0_i32_10 : i32
    %26 = vector.broadcast %25 : i1 to vector<32x1xi1>
    %27 = vector.broadcast %26 : vector<32x1xi1> to vector<32x1xi1>
    %28 = arith.xori %24, %27 : vector<32x1xi1>
    %29 = arith.andi %28, %22 : vector<32x1xi1>
    %30 = vector.broadcast %18 : i32 to vector<32x1xi32>
    %31 = arith.addi %20, %30 : vector<32x1xi32>
    %32 = arith.select %29, %31, %20 : vector<32x1xi1>, vector<32x1xi32>
    %c0_i32_11 = arith.constant 0 : i32
    %33 = vector.broadcast %c0_i32_11 : i32 to vector<32x1xi32>
    %34 = arith.cmpi eq, %32, %33 : vector<32x1xi32>
    %c1_i32_12 = arith.constant 1 : i32
    %35 = tpu.dynamic_rotate %14 by %c1_i32_12 dim 0 : vector<32x128xf32>, i32 -> vector<32x128xf32>
    %cst_13 = arith.constant 0.000000e+00 : f32
    %36 = vector.shape_cast %34 : vector<32x1xi1> to vector<32x1xi1>
    %37 = vector.broadcast %36 : vector<32x1xi1> to vector<32x128xi1>
    %38 = vector.broadcast %cst_13 : f32 to vector<32x128xf32>
    %39 = arith.select %37, %38, %35 : vector<32x128xi1>, vector<32x128xf32>
    %c16_i32_14 = arith.constant 16 : i32
    %c0_i32_15 = arith.constant 0 : i32
    %40 = arith.cmpi eq, %c16_i32_14, %c0_i32_15 : i32
    %c1_i32_16 = arith.constant 1 : i32
    %41 = arith.select %40, %c1_i32_16, %c16_i32_14 : i32
    %42 = vector.broadcast %41 : i32 to vector<32x1xi32>
    %43 = arith.remsi %16, %42 : vector<32x1xi32>
    %c0_i32_17 = arith.constant 0 : i32
    %44 = vector.broadcast %c0_i32_17 : i32 to vector<32x1xi32>
    %45 = arith.cmpi ne, %43, %44 : vector<32x1xi32>
    %c0_i32_18 = arith.constant 0 : i32
    %46 = vector.broadcast %c0_i32_18 : i32 to vector<32x1xi32>
    %47 = arith.cmpi slt, %43, %46 : vector<32x1xi32>
    %c0_i32_19 = arith.constant 0 : i32
    %48 = arith.cmpi slt, %41, %c0_i32_19 : i32
    %49 = vector.broadcast %48 : i1 to vector<32x1xi1>
    %50 = vector.broadcast %49 : vector<32x1xi1> to vector<32x1xi1>
    %51 = arith.xori %47, %50 : vector<32x1xi1>
    %52 = arith.andi %51, %45 : vector<32x1xi1>
    %53 = vector.broadcast %41 : i32 to vector<32x1xi32>
    %54 = arith.addi %43, %53 : vector<32x1xi32>
    %55 = arith.select %52, %54, %43 : vector<32x1xi1>, vector<32x1xi32>
    %c15_i32 = arith.constant 15 : i32
    %56 = vector.broadcast %c15_i32 : i32 to vector<32x1xi32>
    %57 = arith.cmpi eq, %55, %56 : vector<32x1xi32>
    %c31_i32 = arith.constant 31 : i32
    %58 = tpu.dynamic_rotate %14 by %c31_i32 dim 0 : vector<32x128xf32>, i32 -> vector<32x128xf32>
    %cst_20 = arith.constant 0.000000e+00 : f32
    %59 = vector.shape_cast %57 : vector<32x1xi1> to vector<32x1xi1>
    %60 = vector.broadcast %59 : vector<32x1xi1> to vector<32x128xi1>
    %61 = vector.broadcast %cst_20 : f32 to vector<32x128xf32>
    %62 = arith.select %60, %61, %58 : vector<32x128xi1>, vector<32x128xf32>
    %63 = tpu.concatenate %39, %14, %62 in 1 : vector<32x128xf32>, vector<32x128xf32>, vector<32x128xf32> -> vector<32x384xf32>
    %64 = arith.truncf %63 : vector<32x384xf32> to vector<32x384xbf16>
    %c0_21 = arith.constant 0 : index
    %c0_22 = arith.constant 0 : index
    %65 = vector.load %arg3[%c0_21, %c0_22] : memref<384x128xbf16, #tpu.memory_space<vmem>>, vector<384x128xbf16>
    %cst_23 = arith.constant dense<0.000000e+00> : vector<32x128xf32>
    %66 = tpu.matmul %64, %65, %cst_23 {dimension_numbers = #tpu.dot_dimension_numbers<[1], [0], [0], [1], [0, 0, 1, 1], [], []>} : vector<32x384xbf16>, vector<384x128xbf16>, vector<32x128xf32> -> vector<32x128xf32>
    %c2 = arith.constant 2 : index
    %c0_24 = arith.constant 0 : index
    %67 = vector.load %arg4[%c2, %c0_24] : memref<4x256xf32, #tpu.memory_space<vmem>>, vector<1x128xf32>
    %68 = vector.broadcast %67 : vector<1x128xf32> to vector<32x128xf32>
    %69 = arith.mulf %66, %68 : vector<32x128xf32>
    %c3 = arith.constant 3 : index
    %c0_25 = arith.constant 0 : index
    %70 = vector.load %arg4[%c3, %c0_25] : memref<4x256xf32, #tpu.memory_space<vmem>>, vector<1x128xf32>
    %71 = vector.broadcast %70 : vector<1x128xf32> to vector<32x128xf32>
    %72 = arith.addf %69, %71 : vector<32x128xf32>
    %cst_26 = arith.constant 0.000000e+00 : f32
    %73 = vector.broadcast %cst_26 : f32 to vector<32x128xf32>
    %74 = arith.cmpf ogt, %72, %73 : vector<32x128xf32>
    %cst_27 = arith.constant 1.000000e-01 : f32
    %75 = vector.broadcast %cst_27 : f32 to vector<32x128xf32>
    %76 = arith.mulf %75, %72 : vector<32x128xf32>
    %77 = arith.select %74, %72, %76 : vector<32x128xi1>, vector<32x128xf32>
    %78 = arith.addf %77, %15 : vector<32x128xf32>
    %c0_28 = arith.constant 0 : index
    %c0_29 = arith.constant 0 : index
    %79 = vector.load %arg5[%c0_28, %c0_29] : memref<32x128xf32, #tpu.memory_space<vmem>>, vector<32x128xf32>
    tpu.vector_store %arg5[%c0_28, %c0_29], %78 {strides = array<i32>} : memref<32x128xf32, #tpu.memory_space<vmem>>, vector<32x128xf32>,
    return
  }
  func.func @transform_0(%arg0: i32) -> (i32, i32) {
    %c0_i32 = arith.constant 0 : i32
    %c0_i32_0 = arith.constant 0 : i32
    %c0_i32_1 = arith.constant 0 : i32
    return %c0_i32, %c0_i32_0 : i32, i32
  }
  func.func @transform_1(%arg0: i32) -> (i32, i32) {
    %c0_i32 = arith.constant 0 : i32
    %c0_i32_0 = arith.constant 0 : i32
    %c0_i32_1 = arith.constant 0 : i32
    return %c0_i32, %c0_i32_0 : i32, i32
  }
  func.func @transform_2(%arg0: i32) -> (i32, i32) {
    %c0_i32 = arith.constant 0 : i32
    %c0_i32_0 = arith.constant 0 : i32
    %c0_i32_1 = arith.constant 0 : i32
    return %c0_i32, %c0_i32_0 : i32, i32
  }
  func.func @transform_3(%arg0: i32) -> (i32, i32) {
    %c0_i32 = arith.constant 0 : i32
    %c0_i32_0 = arith.constant 0 : i32
    %c0_i32_1 = arith.constant 0 : i32
    return %c0_i32, %c0_i32_0 : i32, i32
  }
  func.func @transform_4(%arg0: i32) -> (i32, i32) {
    %c0_i32 = arith.constant 0 : i32
    %c0_i32_0 = arith.constant 0 : i32
    %c0_i32_1 = arith.constant 0 : i32
    return %c0_i32, %c0_i32_0 : i32, i32
  }
}

</mosaic_0001>

<llo_original>
// kernel: tile.33
$region0: #{tile.33}
  #allocation0 [shape = 's32[1]{0}', space=sflag, size = 0x4, scoped, tag = 'scoped memory for tile.33']
  %s0 = inlined_call_operand.vmem [shape: f32[8], index: 0, kind: input, shape index: {}]
  %s1 = inlined_call_operand.vmem [shape: f32[16,8], index: 1, kind: output, shape index: {}]
  // Predicated region
  $region2: #{tile.33} parent=0 // pred_check
    _
  $region3: #{tile.33} parent=0 // pred_check_branch
    %3 = sbr.rel (0) target = $region5
  $region4: #{tile.33} parent=0 // pred_region
    _
  $region5: #{tile.33} parent=0 // pred_fallthru
    _
  %v4 = vld [vmem:[%s0] ss:$0 sm:$0xff]
  %5 = vst [vmem:[%s1] sm:$0xff] %v4
  %s6 = scalar_lea.vmem %s1, 8
  %7 = vst [vmem:[%s6] sm:$0xff] %v4

// kernel: tile.34
$region0: #{tile.34}
  %s0 = inlined_call_operand.vmem [shape: f32[16,8], index: 0, kind: input, shape index: {}]
  %s1 = inlined_call_operand.vmem [shape: f32[128], index: 1, kind: output, shape index: {}]
  $region1: #{tile.34} parent=0
    #allocation0 [shape = 'u8[4096]{0}', space=vmem, size = 0x1000, scoped, tag = 'scoped mem for output reshape']
    %v2 = vld [vmem:[%s0] sm:$0x1]
    %vm3 = vcmask 64512
    %4 = vst.msk [vmem:[#allocation0] sm:$0x1] %vm3, %v2
    %s5 = scalar_lea.vmem %s0, 15
    %v6 = vld [vmem:[%s5] sm:$0x1]
    %7 = vrot.lane.b32.xlu0 %v6, 120
    %v8 = vpop.permute.xlu0 %7
    %vm9 = vcmask 1048512
    %10 = vst.msk [vmem:[#allocation0] sm:$0x1] %vm9, %v8
    %s11 = scalar_lea.vmem %s0, 14
    %v12 = vld [vmem:[%s11] sm:$0x1]
    %13 = vrot.lane.b32.xlu0 %v12, 112
    %v14 = vpop.permute.xlu0 %13
    %vm15 = vcmask 982912
    %16 = vst.msk [vmem:[#allocation0] sm:$0x1] %vm15, %v14
    %s17 = scalar_lea.vmem %s0, 13
    %v18 = vld [vmem:[%s17] sm:$0x1]
    %19 = vrot.lane.b32.xlu0 %v18, 104
    %v20 = vpop.permute.xlu0 %19
    %vm21 = vcmask 917312
    %22 = vst.msk [vmem:[#allocation0] sm:$0x1] %vm21, %v20
    %s23 = scalar_lea.vmem %s0, 12
    %v24 = vld [vmem:[%s23] sm:$0x1]
    %25 = vrot.lane.b32.xlu0 %v24, 96
    %v26 = vpop.permute.xlu0 %25
    %vm27 = vcmask 851712
    %28 = vst.msk [vmem:[#allocation0] sm:$0x1] %vm27, %v26
    %s29 = scalar_lea.vmem %s0, 11
    %v30 = vld [vmem:[%s29] sm:$0x1]
    %31 = vrot.lane.b32.xlu0 %v30, 88
    %v32 = vpop.permute.xlu0 %31
    %vm33 = vcmask 786112
    %34 = vst.msk [vmem:[#allocation0] sm:$0x1] %vm33, %v32
    %s35 = scalar_lea.vmem %s0, 10
    %v36 = vld [vmem:[%s35] sm:$0x1]
    %37 = vrot.lane.b32.xlu0 %v36, 80
    %v38 = vpop.permute.xlu0 %37
    %vm39 = vcmask 720512
    %40 = vst.msk [vmem:[#allocation0] sm:$0x1] %vm39, %v38
    %s41 = scalar_lea.vmem %s0, 9
    %v42 = vld [vmem:[%s41] sm:$0x1]
    %43 = vrot.lane.b32.xlu0 %v42, 72
    %v44 = vpop.permute.xlu0 %43
    %vm45 = vcmask 654912
    %46 = vst.msk [vmem:[#allocation0] sm:$0x1] %vm45, %v44
    %s47 = scalar_lea.vmem %s0, 8
    %v48 = vld [vmem:[%s47] sm:$0x1]
    %49 = vrot.lane.b32.xlu0 %v48, 64
    %v50 = vpop.permute.xlu0 %49
    %vm51 = vcmask 589312
    %52 = vst.msk [vmem:[#allocation0] sm:$0x1] %vm51, %v50
    %s53 = scalar_lea.vmem %s0, 7
    %v54 = vld [vmem:[%s53] sm:$0x1]
    %55 = vrot.lane.b32.xlu0 %v54, 56
    %v56 = vpop.permute.xlu0 %55
    %vm57 = vcmask 523712
    %58 = vst.msk [vmem:[#allocation0] sm:$0x1] %vm57, %v56
    %s59 = scalar_lea.vmem %s0, 6
    %v60 = vld [vmem:[%s59] sm:$0x1]
    %61 = vrot.lane.b32.xlu0 %v60, 48
    %v62 = vpop.permute.xlu0 %61
    %vm63 = vcmask 458112
    %64 = vst.msk [vmem:[#allocation0] sm:$0x1] %vm63, %v62
    %s65 = scalar_lea.vmem %s0, 5
    %v66 = vld [vmem:[%s65] sm:$0x1]
    %67 = vrot.lane.b32.xlu0 %v66, 40
    %v68 = vpop.permute.xlu0 %67
    %vm69 = vcmask 392512
    %70 = vst.msk [vmem:[#allocation0] sm:$0x1] %vm69, %v68
    %s71 = scalar_lea.vmem %s0, 4
    %v72 = vld [vmem:[%s71] sm:$0x1]
    %73 = vrot.lane.b32.xlu0 %v72, 32
    %v74 = vpop.permute.xlu0 %73
    %vm75 = vcmask 326912
    %76 = vst.msk [vmem:[#allocation0] sm:$0x1] %vm75, %v74
    %s77 = scalar_lea.vmem %s0, 3
    %v78 = vld [vmem:[%s77] sm:$0x1]
    %79 = vrot.lane.b32.xlu0 %v78, 24
    %v80 = vpop.permute.xlu0 %79
    %vm81 = vcmask 261312
    %82 = vst.msk [vmem:[#allocation0] sm:$0x1] %vm81, %v80
    %s83 = scalar_lea.vmem %s0, 2
    %v84 = vld [vmem:[%s83] sm:$0x1]
    %85 = vrot.lane.b32.xlu0 %v84, 16
    %v86 = vpop.permute.xlu0 %85
    %vm87 = vcmask 195712
    %88 = vst.msk [vmem:[#allocation0] sm:$0x1] %vm87, %v86
    %s89 = scalar_lea.vmem %s0, 1
    %v90 = vld [vmem:[%s89] sm:$0x1]
    %91 = vrot.lane.b32.xlu0 %v90, 8
    %v92 = vpop.permute.xlu0 %91
    %vm93 = vcmask 130112
    %94 = vst.msk [vmem:[#allocation0] sm:$0x1] %vm93, %v92
    %s96 = sshllo.u32 0, 1
    %v98 = vld [vmem:[#allocation0] sm:%s96]
    %s99 = sshllo.u32 0, 1
    %100 = vst [vmem:[%s1] sm:%s99] %v98

// kernel: residual_conv_block.1
$region0: #{residual_conv_block.1}
  #allocation0 [shape = 'u32[]', space=smem, size = 0x4, offset = 0x4, fixed_abs, tag = 'smem constant byte address 0x4 - core index']
  #allocation1 [shape = 'u32[144,128]{1,0:T(1,128)}', space=vmem, size = 0x12000, scoped, tag = 'internal scratch']
  %s0 = inlined_call_operand.vmem [shape: bf16[32,192], index: 0, kind: input, shape index: {}]
  %s1 = inlined_call_operand.vmem [shape: bf16[192,256], index: 1, kind: input, shape index: {}]
  %s2 = inlined_call_operand.vmem [shape: bf16[384,128], index: 2, kind: input, shape index: {}]
  %s3 = inlined_call_operand.vmem [shape: f32[4,256], index: 3, kind: input, shape index: {}]
  %s4 = inlined_call_operand.vmem [shape: f32[32,128], index: 4, kind: output, shape index: {}]
  %s5 = sld [smem:[#allocation0]]
  $region26: #{residual_conv_block.1} parent=0
    _
  %s7 = ssub.s32 1, %s5
  %s8 = scalar_select 0, %s7, %s5
  // Predicated region
  $region2: #{residual_conv_block.1} parent=0 // pred_check
    _
  $region3: #{residual_conv_block.1} parent=0 // pred_check_branch
    %10 = sbr.rel (0) target = $region5
  $region4: #{residual_conv_block.1} parent=0 // pred_region
    _
  $region5: #{residual_conv_block.1} parent=0 // pred_fallthru
    _
  // Predicated region
  $region6: #{residual_conv_block.1} parent=0 // pred_check
    _
  $region7: #{residual_conv_block.1} parent=0 // pred_check_branch
    %12 = sbr.rel (0) target = $region9
  $region8: #{residual_conv_block.1} parent=0 // pred_region
    _
  $region9: #{residual_conv_block.1} parent=0 // pred_fallthru
    _
  // Predicated region
  $region10: #{residual_conv_block.1} parent=0 // pred_check
    _
  $region11: #{residual_conv_block.1} parent=0 // pred_check_branch
    %14 = sbr.rel (0) target = $region13
  $region12: #{residual_conv_block.1} parent=0 // pred_region
    _
  $region13: #{residual_conv_block.1} parent=0 // pred_fallthru
    _
  // Predicated region
  $region14: #{residual_conv_block.1} parent=0 // pred_check
    _
  $region15: #{residual_conv_block.1} parent=0 // pred_check_branch
    %16 = sbr.rel (0) target = $region17
  $region16: #{residual_conv_block.1} parent=0 // pred_region
    _
  $region17: #{residual_conv_block.1} parent=0 // pred_fallthru
    _
  %v18 = vld [vmem:[%s0] sm:$0xff]
  %v19 = vld [vmem:[%s0 + $0x8] sm:$0xff]
  %v20 = vld [vmem:[%s0 + $0x10] sm:$0xff]
  %v21 = vld [vmem:[%s0 + $0x18] sm:$0xff]
  %v22 = vld [vmem:[%s1] sm:$0xff]
  %v23 = vld [vmem:[%s1 + $0x8] sm:$0xff]
  %v24 = vld [vmem:[%s1 + $0x10] sm:$0xff]
  %v25 = vld [vmem:[%s1 + $0x18] sm:$0xff]
  %v26 = vld [vmem:[%s1 + $0x20] sm:$0xff]
  %v27 = vld [vmem:[%s1 + $0x28] sm:$0xff]
  %v28 = vld [vmem:[%s1 + $0x30] sm:$0xff]
  %v29 = vld [vmem:[%s1 + $0x38] sm:$0xff]
  %v30 = vld [vmem:[%s1 + $0x40] sm:$0xff]
  %v31 = vld [vmem:[%s1 + $0x48] sm:$0xff]
  %v32 = vld [vmem:[%s1 + $0x50] sm:$0xff]
  %v33 = vld [vmem:[%s1 + $0x58] sm:$0xff]
  %v34 = vld [vmem:[%s1 + $0x60] sm:$0xff]
  %v35 = vld [vmem:[%s1 + $0x68] sm:$0xff]
  %v36 = vld [vmem:[%s1 + $0x70] sm:$0xff]
  %v37 = vld [vmem:[%s1 + $0x78] sm:$0xff]
  %v38 = vld [vmem:[%s1 + $0x80] sm:$0xff]
  %v39 = vld [vmem:[%s1 + $0x88] sm:$0xff]
  %v40 = vld [vmem:[%s1 + $0x90] sm:$0xff]
  %v41 = vld [vmem:[%s1 + $0x98] sm:$0xff]
  %v42 = vld [vmem:[%s1 + $0xa0] sm:$0xff]
  %v43 = vld [vmem:[%s1 + $0xa8] sm:$0xff]
  %v44 = vld [vmem:[%s1 + $0xb0] sm:$0xff]
  %v45 = vld [vmem:[%s1 + $0xb8] sm:$0xff]
  %v50 = vunpack.c.l.b16 %v18
  %v51 = vunpack.c.h.b16 %v18
  %v52 = vunpack.c.l.b16 %v19
  %v53 = vunpack.c.h.b16 %v19
  %v54 = vunpack.c.l.b16 %v20
  %v55 = vunpack.c.h.b16 %v20
  %v56 = vunpack.c.l.b16 %v21
  %v57 = vunpack.c.h.b16 %v21
  %v58 = vpack.c.b16 %v52, %v50
  %v59 = vpack.c.b16 %v53, %v51
  %v60 = vpack.c.b16 %v56, %v54
  %v61 = vpack.c.b16 %v57, %v55
  %v88 = vunpack.c.l.b16 %v22
  %v89 = vunpack.c.h.b16 %v22
  %v90 = vunpack.c.l.b16 %v23
  %v91 = vunpack.c.h.b16 %v23
  %v92 = vunpack.c.l.b16 %v24
  %v93 = vunpack.c.h.b16 %v24
  %v94 = vunpack.c.l.b16 %v25
  %v95 = vunpack.c.h.b16 %v25
  %v96 = vunpack.c.l.b16 %v26
  %v97 = vunpack.c.h.b16 %v26
  %v98 = vunpack.c.l.b16 %v27
  %v99 = vunpack.c.h.b16 %v27
  %v100 = vunpack.c.l.b16 %v28
  %v101 = vunpack.c.h.b16 %v28
  %v102 = vunpack.c.l.b16 %v29
  %v103 = vunpack.c.h.b16 %v29
  %v104 = vunpack.c.l.b16 %v30
  %v105 = vunpack.c.h.b16 %v30
  %v106 = vunpack.c.l.b16 %v31
  %v107 = vunpack.c.h.b16 %v31
  %v108 = vunpack.c.l.b16 %v32
  %v109 = vunpack.c.h.b16 %v32
  %v110 = vunpack.c.l.b16 %v33
  %v111 = vunpack.c.h.b16 %v33
  %v112 = vunpack.c.l.b16 %v34
  %v113 = vunpack.c.h.b16 %v34
  %v114 = vunpack.c.l.b16 %v35
  %v115 = vunpack.c.h.b16 %v35
  %v116 = vunpack.c.l.b16 %v36
  %v117 = vunpack.c.h.b16 %v36
  %v118 = vunpack.c.l.b16 %v37
  %v119 = vunpack.c.h.b16 %v37
  %v120 = vunpack.c.l.b16 %v38
  %v121 = vunpack.c.h.b16 %v38
  %v122 = vunpack.c.l.b16 %v39
  %v123 = vunpack.c.h.b16 %v39
  %v124 = vunpack.c.l.b16 %v40
  %v125 = vunpack.c.h.b16 %v40
  %v126 = vunpack.c.l.b16 %v41
  %v127 = vunpack.c.h.b16 %v41
  %v128 = vunpack.c.l.b16 %v42
  %v129 = vunpack.c.h.b16 %v42
  %v130 = vunpack.c.l.b16 %v43
  %v131 = vunpack.c.h.b16 %v43
  %v132 = vunpack.c.l.b16 %v44
  %v133 = vunpack.c.h.b16 %v44
  %v134 = vunpack.c.l.b16 %v45
  %v135 = vunpack.c.h.b16 %v45
  %v136 = vpack.c.b16 %v90, %v88
  %v137 = vpack.c.b16 %v91, %v89
  %v138 = vpack.c.b16 %v94, %v92
  %v139 = vpack.c.b16 %v95, %v93
  %v140 = vpack.c.b16 %v98, %v96
  %v141 = vpack.c.b16 %v99, %v97
  %v142 = vpack.c.b16 %v102, %v100
  %v143 = vpack.c.b16 %v103, %v101
  %v144 = vpack.c.b16 %v106, %v104
  %v145 = vpack.c.b16 %v107, %v105
  %v146 = vpack.c.b16 %v110, %v108
  %v147 = vpack.c.b16 %v111, %v109
  %v148 = vpack.c.b16 %v114, %v112
  %v149 = vpack.c.b16 %v115, %v113
  %v150 = vpack.c.b16 %v118, %v116
  %v151 = vpack.c.b16 %v119, %v117
  %v152 = vpack.c.b16 %v122, %v120
  %v153 = vpack.c.b16 %v123, %v121
  %v154 = vpack.c.b16 %v126, %v124
  %v155 = vpack.c.b16 %v127, %v125
  %v156 = vpack.c.b16 %v130, %v128
  %v157 = vpack.c.b16 %v131, %v129
  %v158 = vpack.c.b16 %v134, %v132
  %v159 = vpack.c.b16 %v135, %v133
  %vm184 = vcmask 523264
  %v186 = vsel %vm184, %v59, 0
  %v189 = vsel %vm184, %v61, 0
  %191 = vmatprep.subr.bf16.mxu0 %v137
  %192 = vmatpush1.bf16.msra.mxu0 %v136
  %193 = vmatprep.subr.bf16.mxu0 %v139
  %194 = vmatpush1.bf16.msra.mxu0 %v138
  %195 = vmatprep.subr.bf16.mxu0 %v141
  %196 = vmatpush1.bf16.msra.mxu0 %v140
  %197 = vmatprep.subr.bf16.mxu0 %v143
  %198 = vmatpush1.bf16.msra.mxu0 %v142
  %199 = vmatprep.subr.bf16.mxu0 %v145
  %200 = vmatpush1.bf16.msra.mxu0 %v144
  %201 = vmatprep.subr.bf16.mxu0 %v147
  %202 = vmatpush1.bf16.msra.mxu0 %v146
  %203 = vmatprep.subr.bf16.mxu0 %v149
  %204 = vmatpush1.bf16.msra.mxu0 %v148
  %205 = vmatprep.subr.bf16.mxu0 %v151
  %206 = vmatpush1.bf16.msra.mxu0 %v150
  %207 = vmatprep.subr.bf16.mxu0 %v153
  %208 = vmatpush1.bf16.msra.mxu0 %v152
  %209 = vmatprep.subr.bf16.mxu0 %v155
  %210 = vmatpush1.bf16.msra.mxu0 %v154
  %211 = vmatprep.subr.bf16.mxu0 %v157
  %212 = vmatpush1.bf16.msra.mxu0 %v156
  %213 = vmatprep.subr.bf16.mxu0 %v159
  %214 = vmatpush1.bf16.msra.mxu0 %v158
  %215 = vmatprep.subr.bf16.mxu0 0
  %216 = vmatpush1.bf16.msra.mxu0 0
  %217 = vmatprep.subr.bf16.mxu0 0
  %218 = vmatpush1.bf16.msra.mxu0 0
  %219 = vmatprep.subr.bf16.mxu0 0
  %220 = vmatpush1.bf16.msra.mxu0 0
  %221 = vmatprep.subr.bf16.mxu0 0
  %222 = vmatpush1.bf16.msra.mxu0 0
  %223 = vmatprep.mubr.bf16.mxu0 %v186
  %224 = vmatmul.mubr.bf16.gmra.mrb[0].mxu0 %v58
  %v225 = vpop.f32.mrb[0].mxu0
  %v226 = vadd.f32 0.0, %v225
  %v227 = vpop.f32.mrb[0].mxu0
  %v228 = vadd.f32 0.0, %v227
  %v229 = vpop.f32.mrb[0].mxu0
  %v230 = vadd.f32 0.0, %v229
  %v231 = vpop.f32.mrb[0].mxu0
  %v232 = vadd.f32 0.0, %v231
  %233 = vmatprep.mubr.bf16.mxu0 %v189
  %234 = vmatmul.mubr.bf16.gmra.mrb[0].mxu0 %v60
  %v235 = vpop.f32.mrb[0].mxu0
  %v236 = vadd.f32 0.0, %v235
  %v237 = vpop.f32.mrb[0].mxu0
  %v238 = vadd.f32 0.0, %v237
  %v239 = vpop.f32.mrb[0].mxu0
  %v240 = vadd.f32 0.0, %v239
  %v241 = vpop.f32.mrb[0].mxu0
  %v242 = vadd.f32 0.0, %v241
  %243 = vdwg.mxu0
  %v244 = vld [vmem:[%s3] ss:$4 sm:$0x3]
  %v246 = vlaneseq
  %v247 = vshrl.u32 %v246, 7
  %v248 = vsub.s32 0, %v247
  %v249 = vrot.slane %v244, %v248
  %v250 = vlaneseq
  %v251 = vshrl.u32 %v250, 7
  %v252 = vsub.s32 1, %v251
  %v253 = vrot.slane %v244, %v252
  %v256 = vmul.f32 %v226, %v249
  %v257 = vmul.f32 %v228, %v253
  %v258 = vmul.f32 %v230, %v249
  %v259 = vmul.f32 %v232, %v253
  %v260 = vmul.f32 %v236, %v249
  %v261 = vmul.f32 %v238, %v253
  %v262 = vmul.f32 %v240, %v249
  %v263 = vmul.f32 %v242, %v253
  %s264 = scalar_lea.vmem %s3, 1
  %v265 = vld [vmem:[%s264] ss:$4 sm:$0x3]
  %v267 = vlaneseq
  %v268 = vshrl.u32 %v267, 7
  %v269 = vsub.s32 0, %v268
  %v270 = vrot.slane %v265, %v269
  %v271 = vlaneseq
  %v272 = vshrl.u32 %v271, 7
  %v273 = vsub.s32 1, %v272
  %v274 = vrot.slane %v265, %v273
  %v277 = vadd.f32 %v256, %v270
  %v278 = vadd.f32 %v257, %v274
  %v279 = vadd.f32 %v258, %v270
  %v280 = vadd.f32 %v259, %v274
  %v281 = vadd.f32 %v260, %v270
  %v282 = vadd.f32 %v261, %v274
  %v283 = vadd.f32 %v262, %v270
  %v284 = vadd.f32 %v263, %v274
  %vm285 = vcmp.gt.f32.partialorder %v277, 0.0
  %vm286 = vcmp.gt.f32.partialorder %v279, 0.0
  %vm287 = vcmp.gt.f32.partialorder %v281, 0.0
  %vm288 = vcmp.gt.f32.partialorder %v283, 0.0
  %v289 = vmul.f32 %v277, 0.1
  %v290 = vmul.f32 %v279, 0.1
  %v291 = vmul.f32 %v281, 0.1
  %v292 = vmul.f32 %v283, 0.1
  %v293 = vsel %vm285, %v277, %v289
  %v294 = vsel %vm286, %v279, %v290
  %v295 = vsel %vm287, %v281, %v291
  %v296 = vsel %vm288, %v283, %v292
  %v297 = vlaneseq
  %v298 = vshrl.u32 %v297, 7
  %v299 = vadd.s32 %v298, 8
  %v300 = vadd.s32 %v298, 16
  %v301 = vadd.s32 %v298, 24
  %vm302 = vcmp.lt.s32.totalorder %v298, 0
  %v303 = vsub.s32 0, %v298
  %v304 = vsel %vm302, %v303, %v298
  %v305 = vshrl.u32 %v304, 4
  %v306 = vand.u32 %v304, 15
  %v307 = vsub.s32 0, %v306
  %v308 = vsel %vm302, %v307, %v306
  %vm309 = vcmp.lt.s32.totalorder %v299, 0
  %v310 = vsub.s32 0, %v299
  %v311 = vsel %vm309, %v310, %v299
  %v312 = vshrl.u32 %v311, 4
  %v313 = vand.u32 %v311, 15
  %v314 = vsub.s32 0, %v313
  %v315 = vsel %vm309, %v314, %v313
  %vm316 = vcmp.lt.s32.totalorder %v300, 0
  %v317 = vsub.s32 0, %v300
  %v318 = vsel %vm316, %v317, %v300
  %v319 = vshrl.u32 %v318, 4
  %v320 = vand.u32 %v318, 15
  %v321 = vsub.s32 0, %v320
  %v322 = vsel %vm316, %v321, %v320
  %vm323 = vcmp.lt.s32.totalorder %v301, 0
  %v324 = vsub.s32 0, %v301
  %v325 = vsel %vm323, %v324, %v301
  %v326 = vshrl.u32 %v325, 4
  %v327 = vand.u32 %v325, 15
  %v328 = vsub.s32 0, %v327
  %v329 = vsel %vm323, %v328, %v327
  %vm330 = vcmp.ne.s32.totalorder %v308, 0
  %vm331 = vcmp.ne.s32.totalorder %v315, 0
  %vm332 = vcmp.ne.s32.totalorder %v322, 0
  %vm333 = vcmp.ne.s32.totalorder %v329, 0
  %vm334 = vcmp.lt.s32.totalorder %v308, 0
  %vm335 = vcmp.lt.s32.totalorder %v315, 0
  %vm336 = vcmp.lt.s32.totalorder %v322, 0
  %vm337 = vcmp.lt.s32.totalorder %v329, 0
  %vm338 = vmand %vm334, %vm330
  %vm339 = vmand %vm335, %vm331
  %vm340 = vmand %vm336, %vm332
  %vm341 = vmand %vm337, %vm333
  %v342 = vadd.s32 %v308, 16
  %v343 = vadd.s32 %v315, 16
  %v344 = vadd.s32 %v322, 16
  %v345 = vadd.s32 %v329, 16
  %v346 = vsel %vm338, %v342, %v308
  %v347 = vsel %vm339, %v343, %v315
  %v348 = vsel %vm340, %v344, %v322
  %v349 = vsel %vm341, %v345, %v329
  %vm350 = vcmp.eq.s32.totalorder %v346, 0
  %vm351 = vcmp.eq.s32.totalorder %v347, 0
  %vm352 = vcmp.eq.s32.totalorder %v348, 0
  %vm353 = vcmp.eq.s32.totalorder %v349, 0
  %v354 = vrot.slane %v293, 7
  %v355 = vrot.slane %v294, 7
  %v356 = vrot.slane %v295, 7
  %v357 = vrot.slane %v296, 7
  %vm358 = vcmp.lt.s32.totalorder %v298, 1
  %v359 = vsel %vm358, %v356, %v357
  %v360 = vsel %vm358, %v355, %v356
  %v361 = vsel %vm358, %v354, %v355
  %v362 = vsel %vm358, %v357, %v354
  %v363 = vsel %vm350, 1, 0
  %v364 = vsel %vm351, 1, 0
  %v365 = vsel %vm352, 1, 0
  %v366 = vsel %vm353, 1, 0
  %vm367 = vcmp.eq.s32.totalorder %v363, 1
  %vm368 = vcmp.eq.s32.totalorder %v364, 1
  %vm369 = vcmp.eq.s32.totalorder %v365, 1
  %vm370 = vcmp.eq.s32.totalorder %v366, 1
  %v371 = vsel %vm367, 0.0, %v362
  %v372 = vsel %vm368, 0.0, %v361
  %v373 = vsel %vm369, 0.0, %v360
  %v374 = vsel %vm370, 0.0, %v359
  %vm375 = vcmp.eq.s32.totalorder %v346, 15
  %vm376 = vcmp.eq.s32.totalorder %v347, 15
  %vm377 = vcmp.eq.s32.totalorder %v348, 15
  %vm378 = vcmp.eq.s32.totalorder %v349, 15
  %v379 = vrot.slane %v293, 1
  %v380 = vrot.slane %v294, 1
  %v381 = vrot.slane %v295, 1
  %v382 = vrot.slane %v296, 1
  %vm383 = vcmp.lt.s32.totalorder %v298, 7
  %v384 = vsel %vm383, %v381, %v382
  %v385 = vsel %vm383, %v380, %v381
  %v386 = vsel %vm383, %v379, %v380
  %v387 = vsel %vm383, %v382, %v379
  %v388 = vsel %vm375, 1, 0
  %v389 = vsel %vm376, 1, 0
  %v390 = vsel %vm377, 1, 0
  %v391 = vsel %vm378, 1, 0
  %vm392 = vcmp.eq.s32.totalorder %v388, 1
  %vm393 = vcmp.eq.s32.totalorder %v389, 1
  %vm394 = vcmp.eq.s32.totalorder %v390, 1
  %vm395 = vcmp.eq.s32.totalorder %v391, 1
  %v396 = vsel %vm392, 0.0, %v386
  %v397 = vsel %vm393, 0.0, %v385
  %v398 = vsel %vm394, 0.0, %v384
  %v399 = vsel %vm395, 0.0, %v387
  %v400 = vpack.c.bf16 %v372, %v371
  %v401 = vpack.c.bf16 %v294, %v293
  %v402 = vpack.c.bf16 %v397, %v396
  %v403 = vpack.c.bf16 %v374, %v373
  %v404 = vpack.c.bf16 %v296, %v295
  %v405 = vpack.c.bf16 %v399, %v398
  %v406 = vld [vmem:[%s2] sm:$0xf]
  %v407 = vld [vmem:[%s2 + $0x4] sm:$0xf]
  %v408 = vld [vmem:[%s2 + $0x8] sm:$0xf]
  %v409 = vld [vmem:[%s2 + $0xc] sm:$0xf]
  %v410 = vld [vmem:[%s2 + $0x10] sm:$0xf]
  %v411 = vld [vmem:[%s2 + $0x14] sm:$0xf]
  %v412 = vld [vmem:[%s2 + $0x18] sm:$0xf]
  %v413 = vld [vmem:[%s2 + $0x1c] sm:$0xf]
  %v414 = vld [vmem:[%s2 + $0x20] sm:$0xf]
  %v415 = vld [vmem:[%s2 + $0x24] sm:$0xf]
  %v416 = vld [vmem:[%s2 + $0x28] sm:$0xf]
  %v417 = vld [vmem:[%s2 + $0x2c] sm:$0xf]
  %v418 = vld [vmem:[%s2 + $0x30] sm:$0xf]
  %v419 = vld [vmem:[%s2 + $0x34] sm:$0xf]
  %v420 = vld [vmem:[%s2 + $0x38] sm:$0xf]
  %v421 = vld [vmem:[%s2 + $0x3c] sm:$0xf]
  %v422 = vld [vmem:[%s2 + $0x40] sm:$0xf]
  %v423 = vld [vmem:[%s2 + $0x44] sm:$0xf]
  %v424 = vld [vmem:[%s2 + $0x48] sm:$0xf]
  %v425 = vld [vmem:[%s2 + $0x4c] sm:$0xf]
  %v426 = vld [vmem:[%s2 + $0x50] sm:$0xf]
  %v427 = vld [vmem:[%s2 + $0x54] sm:$0xf]
  %v428 = vld [vmem:[%s2 + $0x58] sm:$0xf]
  %v429 = vld [vmem:[%s2 + $0x5c] sm:$0xf]
  %v430 = vld [vmem:[%s2 + $0x60] sm:$0xf]
  %v431 = vld [vmem:[%s2 + $0x64] sm:$0xf]
  %v432 = vld [vmem:[%s2 + $0x68] sm:$0xf]
  %v433 = vld [vmem:[%s2 + $0x6c] sm:$0xf]
  %v434 = vld [vmem:[%s2 + $0x70] sm:$0xf]
  %v435 = vld [vmem:[%s2 + $0x74] sm:$0xf]
  %v436 = vld [vmem:[%s2 + $0x78] sm:$0xf]
  %v437 = vld [vmem:[%s2 + $0x7c] sm:$0xf]
  %v438 = vld [vmem:[%s2 + $0x80] sm:$0xf]
  %v439 = vld [vmem:[%s2 + $0x84] sm:$0xf]
  %v440 = vld [vmem:[%s2 + $0x88] sm:$0xf]
  %v441 = vld [vmem:[%s2 + $0x8c] sm:$0xf]
  %v442 = vld [vmem:[%s2 + $0x90] sm:$0xf]
  %v443 = vld [vmem:[%s2 + $0x94] sm:$0xf]
  %v444 = vld [vmem:[%s2 + $0x98] sm:$0xf]
  %v445 = vld [vmem:[%s2 + $0x9c] sm:$0xf]
  %v446 = vld [vmem:[%s2 + $0xa0] sm:$0xf]
  %v447 = vld [vmem:[%s2 + $0xa4] sm:$0xf]
  %v448 = vld [vmem:[%s2 + $0xa8] sm:$0xf]
  %v449 = vld [vmem:[%s2 + $0xac] sm:$0xf]
  %v450 = vld [vmem:[%s2 + $0xb0] sm:$0xf]
  %v451 = vld [vmem:[%s2 + $0xb4] sm:$0xf]
  %v452 = vld [vmem:[%s2 + $0xb8] sm:$0xf]
  %v453 = vld [vmem:[%s2 + $0xbc] sm:$0xf]
  %v502 = vunpack.c.l.b16 %v406
  %v503 = vunpack.c.l.b16 %v407
  %v504 = vunpack.c.l.b16 %v408
  %v505 = vunpack.c.l.b16 %v409
  %v506 = vunpack.c.l.b16 %v410
  %v507 = vunpack.c.l.b16 %v411
  %v508 = vunpack.c.l.b16 %v412
  %v509 = vunpack.c.l.b16 %v413
  %v510 = vunpack.c.l.b16 %v414
  %v511 = vunpack.c.l.b16 %v415
  %v512 = vunpack.c.l.b16 %v416
  %v513 = vunpack.c.l.b16 %v417
  %v514 = vunpack.c.l.b16 %v418
  %v515 = vunpack.c.l.b16 %v419
  %v516 = vunpack.c.l.b16 %v420
  %v517 = vunpack.c.l.b16 %v421
  %v518 = vunpack.c.l.b16 %v422
  %v519 = vunpack.c.l.b16 %v423
  %v520 = vunpack.c.l.b16 %v424
  %v521 = vunpack.c.l.b16 %v425
  %v522 = vunpack.c.l.b16 %v426
  %v523 = vunpack.c.l.b16 %v427
  %v524 = vunpack.c.l.b16 %v428
  %v525 = vunpack.c.l.b16 %v429
  %v526 = vunpack.c.l.b16 %v430
  %v527 = vunpack.c.l.b16 %v431
  %v528 = vunpack.c.l.b16 %v432
  %v529 = vunpack.c.l.b16 %v433
  %v530 = vunpack.c.l.b16 %v434
  %v531 = vunpack.c.l.b16 %v435
  %v532 = vunpack.c.l.b16 %v436
  %v533 = vunpack.c.l.b16 %v437
  %v534 = vunpack.c.l.b16 %v438
  %v535 = vunpack.c.l.b16 %v439
  %v536 = vunpack.c.l.b16 %v440
  %v537 = vunpack.c.l.b16 %v441
  %v538 = vunpack.c.l.b16 %v442
  %v539 = vunpack.c.l.b16 %v443
  %v540 = vunpack.c.l.b16 %v444
  %v541 = vunpack.c.l.b16 %v445
  %v542 = vunpack.c.l.b16 %v446
  %v543 = vunpack.c.l.b16 %v447
  %v544 = vunpack.c.l.b16 %v448
  %v545 = vunpack.c.l.b16 %v449
  %v546 = vunpack.c.l.b16 %v450
  %v547 = vunpack.c.l.b16 %v451
  %v548 = vunpack.c.l.b16 %v452
  %v549 = vunpack.c.l.b16 %v453
  %v550 = vpack.c.b16 %v503, %v502
  %v551 = vpack.c.b16 %v505, %v504
  %v552 = vpack.c.b16 %v507, %v506
  %v553 = vpack.c.b16 %v509, %v508
  %v554 = vpack.c.b16 %v511, %v510
  %v555 = vpack.c.b16 %v513, %v512
  %v556 = vpack.c.b16 %v515, %v514
  %v557 = vpack.c.b16 %v517, %v516
  %v558 = vpack.c.b16 %v519, %v518
  %v559 = vpack.c.b16 %v521, %v520
  %v560 = vpack.c.b16 %v523, %v522
  %v561 = vpack.c.b16 %v525, %v524
  %v562 = vpack.c.b16 %v527, %v526
  %v563 = vpack.c.b16 %v529, %v528
  %v564 = vpack.c.b16 %v531, %v530
  %v565 = vpack.c.b16 %v533, %v532
  %v566 = vpack.c.b16 %v535, %v534
  %v567 = vpack.c.b16 %v537, %v536
  %v568 = vpack.c.b16 %v539, %v538
  %v569 = vpack.c.b16 %v541, %v540
  %v570 = vpack.c.b16 %v543, %v542
  %v571 = vpack.c.b16 %v545, %v544
  %v572 = vpack.c.b16 %v547, %v546
  %v573 = vpack.c.b16 %v549, %v548
  %598 = vmatprep.subr.bf16.mxu0 0
  %599 = vmatpush1.bf16.msra.mxu0 %v550
  %600 = vmatprep.subr.bf16.mxu0 0
  %601 = vmatpush1.bf16.msra.mxu0 %v551
  %602 = vmatprep.subr.bf16.mxu0 0
  %603 = vmatpush1.bf16.msra.mxu0 %v552
  %604 = vmatprep.subr.bf16.mxu0 0
  %605 = vmatpush1.bf16.msra.mxu0 %v553
  %606 = vmatprep.subr.bf16.mxu0 0
  %607 = vmatpush1.bf16.msra.mxu0 %v554
  %608 = vmatprep.subr.bf16.mxu0 0
  %609 = vmatpush1.bf16.msra.mxu0 %v555
  %610 = vmatprep.subr.bf16.mxu0 0
  %611 = vmatpush1.bf16.msra.mxu0 %v556
  %612 = vmatprep.subr.bf16.mxu0 0
  %613 = vmatpush1.bf16.msra.mxu0 %v557
  %614 = vmatprep.subr.bf16.mxu0 0
  %615 = vmatpush1.bf16.msra.mxu0 %v558
  %616 = vmatprep.subr.bf16.mxu0 0
  %617 = vmatpush1.bf16.msra.mxu0 %v559
  %618 = vmatprep.subr.bf16.mxu0 0
  %619 = vmatpush1.bf16.msra.mxu0 %v560
  %620 = vmatprep.subr.bf16.mxu0 0
  %621 = vmatpush1.bf16.msra.mxu0 %v561
  %622 = vmatprep.subr.bf16.mxu0 0
  %623 = vmatpush1.bf16.msra.mxu0 %v562
  %624 = vmatprep.subr.bf16.mxu0 0
  %625 = vmatpush1.bf16.msra.mxu0 %v563
  %626 = vmatprep.subr.bf16.mxu0 0
  %627 = vmatpush1.bf16.msra.mxu0 %v564
  %628 = vmatprep.subr.bf16.mxu0 0
  %629 = vmatpush1.bf16.msra.mxu0 %v565
  %630 = vmatprep.mubr.bf16.mxu0 %v401
  %631 = vmatmul.mubr.bf16.gmra.mrb[0].mxu0 %v400
  %v632 = vpop.f32.mrb[0].mxu0
  %v633 = vadd.f32 0.0, %v632
  %v634 = vpop.f32.mrb[0].mxu0
  %v635 = vpop.f32.mrb[0].mxu0
  %v636 = vadd.f32 0.0, %v635
  %v637 = vpop.f32.mrb[0].mxu0
  %638 = vmatprep.mubr.bf16.mxu0 %v404
  %639 = vmatmul.mubr.bf16.gmra.mrb[0].mxu0 %v403
  %v640 = vpop.f32.mrb[0].mxu0
  %v641 = vadd.f32 0.0, %v640
  %v642 = vpop.f32.mrb[0].mxu0
  %v643 = vpop.f32.mrb[0].mxu0
  %v644 = vadd.f32 0.0, %v643
  %v645 = vpop.f32.mrb[0].mxu0
  %646 = vdwg.mxu0
  %647 = vmatprep.subr.bf16.mxu0 0
  %648 = vmatpush1.bf16.msra.mxu0 %v566
  %649 = vmatprep.subr.bf16.mxu0 0
  %650 = vmatpush1.bf16.msra.mxu0 %v567
  %651 = vmatprep.subr.bf16.mxu0 0
  %652 = vmatpush1.bf16.msra.mxu0 %v568
  %653 = vmatprep.subr.bf16.mxu0 0
  %654 = vmatpush1.bf16.msra.mxu0 %v569
  %655 = vmatprep.subr.bf16.mxu0 0
  %656 = vmatpush1.bf16.msra.mxu0 %v570
  %657 = vmatprep.subr.bf16.mxu0 0
  %658 = vmatpush1.bf16.msra.mxu0 %v571
  %659 = vmatprep.subr.bf16.mxu0 0
  %660 = vmatpush1.bf16.msra.mxu0 %v572
  %661 = vmatprep.subr.bf16.mxu0 0
  %662 = vmatpush1.bf16.msra.mxu0 %v573
  %663 = vmatprep.subr.bf16.mxu0 0
  %664 = vmatpush1.bf16.msra.mxu0 0
  %665 = vmatprep.subr.bf16.mxu0 0
  %666 = vmatpush1.bf16.msra.mxu0 0
  %667 = vmatprep.subr.bf16.mxu0 0
  %668 = vmatpush1.bf16.msra.mxu0 0
  %669 = vmatprep.subr.bf16.mxu0 0
  %670 = vmatpush1.bf16.msra.mxu0 0
  %671 = vmatprep.subr.bf16.mxu0 0
  %672 = vmatpush1.bf16.msra.mxu0 0
  %673 = vmatprep.subr.bf16.mxu0 0
  %674 = vmatpush1.bf16.msra.mxu0 0
  %675 = vmatprep.subr.bf16.mxu0 0
  %676 = vmatpush1.bf16.msra.mxu0 0
  %677 = vmatprep.subr.bf16.mxu0 0
  %678 = vmatpush1.bf16.msra.mxu0 0
  %679 = vmatprep.mubr.bf16.mxu0 0
  %680 = vmatmul.mubr.bf16.gmra.mrb[0].mxu0 %v402
  %v681 = vpop.f32.mrb[0].mxu0
  %v682 = vadd.f32 %v633, %v681
  %v683 = vpop.f32.mrb[0].mxu0
  %v684 = vpop.f32.mrb[0].mxu0
  %v685 = vadd.f32 %v636, %v684
  %v686 = vpop.f32.mrb[0].mxu0
  %687 = vmatprep.mubr.bf16.mxu0 0
  %688 = vmatmul.mubr.bf16.gmra.mrb[0].mxu0 %v405
  %v689 = vpop.f32.mrb[0].mxu0
  %v690 = vadd.f32 %v641, %v689
  %v691 = vpop.f32.mrb[0].mxu0
  %v692 = vpop.f32.mrb[0].mxu0
  %v693 = vadd.f32 %v644, %v692
  %v694 = vpop.f32.mrb[0].mxu0
  %695 = vdwg.mxu0
  %v696 = vld [vmem:[%s3 + $0x2] sm:$0x1]
  %v697 = vlaneseq
  %v698 = vshrl.u32 %v697, 7
  %v699 = vsub.s32 0, %v698
  %v700 = vrot.slane %v696, %v699
  %v701 = vmul.f32 %v682, %v700
  %v702 = vmul.f32 %v685, %v700
  %v703 = vmul.f32 %v690, %v700
  %v704 = vmul.f32 %v693, %v700
  %v705 = vld [vmem:[%s3 + $0x3] sm:$0x1]
  %v706 = vlaneseq
  %v707 = vshrl.u32 %v706, 7
  %v708 = vsub.s32 0, %v707
  %v709 = vrot.slane %v705, %v708
  %v710 = vadd.f32 %v701, %v709
  %v711 = vadd.f32 %v702, %v709
  %v712 = vadd.f32 %v703, %v709
  %v713 = vadd.f32 %v704, %v709
  %vm714 = vcmp.gt.f32.partialorder %v710, 0.0
  %vm715 = vcmp.gt.f32.partialorder %v711, 0.0
  %vm716 = vcmp.gt.f32.partialorder %v712, 0.0
  %vm717 = vcmp.gt.f32.partialorder %v713, 0.0
  %v718 = vmul.f32 %v710, 0.1
  %v719 = vmul.f32 %v711, 0.1
  %v720 = vmul.f32 %v712, 0.1
  %v721 = vmul.f32 %v713, 0.1
  %v722 = vsel %vm714, %v710, %v718
  %v723 = vsel %vm715, %v711, %v719
  %v724 = vsel %vm716, %v712, %v720
  %v725 = vsel %vm717, %v713, %v721
  %v726 = vadd.f32 %v722, %v278
  %v727 = vadd.f32 %v723, %v280
  %v728 = vadd.f32 %v724, %v282
  %v729 = vadd.f32 %v725, %v284
  %730 = vst [vmem:[%s4] sm:$0xff] %v726
  %731 = vst [vmem:[%s4 + $0x8] sm:$0xff] %v727
  %732 = vst [vmem:[%s4 + $0x10] sm:$0xff] %v728
  %733 = vst [vmem:[%s4 + $0x18] sm:$0xff] %v729
  // Predicated region
  $region18: #{residual_conv_block.1} parent=0 // pred_check
    _
  $region19: #{residual_conv_block.1} parent=0 // pred_check_branch
    %735 = sbr.rel (0) target = $region21
  $region20: #{residual_conv_block.1} parent=0 // pred_region
    _
  $region21: #{residual_conv_block.1} parent=0 // pred_fallthru
    _
  // Predicated region
  $region22: #{residual_conv_block.1} parent=0 // pred_check
    _
  $region23: #{residual_conv_block.1} parent=0 // pred_check_branch
    %737 = sbr.rel (0) target = $region25
  $region24: #{residual_conv_block.1} parent=0 // pred_region
    _
  $region25: #{residual_conv_block.1} parent=0 // pred_fallthru
    _

</llo_original>
